<compile_context>
chip_gen: v5e
topology: v5e:2x2
jax: 0.10.0
libtpu: 0.0.40
codegen_flags: <defaults>
</compile_context>

<pallas_src>
import functools

import jax
import jax.numpy as jnp
from jax.experimental import pallas as pl
from jax.experimental.pallas import tpu as pltpu


# -----------------------------------------------------------------------------
# Tiling helpers
# -----------------------------------------------------------------------------
def _round_up(x, m):
    return ((x + m - 1) // m) * m


def _choose_tile(dim, max_tile, align):
    """Full dim if small, else the largest aligned divisor, else the full dim."""
    if dim <= max_tile:
        return dim
    t = (max_tile // align) * align
    while t >= align:
        if dim % t == 0:
            return t
        t -= align
    return dim


def _plan_rows(M, tm_max):
    """Return (tm, padded_M) with padded_M % tm == 0 and tm respecting the 8-sublane rule."""
    if M <= tm_max:
        return M, M                      # one full-dim block (legal: block == full array dim)
    tm = max(8, (tm_max // 8) * 8)
    if M % tm == 0:
        return tm, M
    t = tm
    while t >= 64:                       # prefer a reasonably large aligned divisor
        if M % t == 0:
            return t, M
        t -= 8
    return tm, _round_up(M, tm)          # otherwise pad rows up to a tile multiple


# -----------------------------------------------------------------------------
# Pallas kernels
# -----------------------------------------------------------------------------
def _linear_kernel(*refs, act, has_ln, ln_eps, has_res, has_out_ln, out_ln_eps):
    """(optional LN prologue) -> bf16 MXU matmul accumulated over K in f32 ->
    bias / activation / residual / (optional output-LN) epilogue."""
    idx = 0
    x_ref = refs[idx]; idx += 1
    w_ref = refs[idx]; idx += 1
    b_ref = refs[idx]; idx += 1
    if has_ln:
        g_ref, gb_ref = refs[idx], refs[idx + 1]; idx += 2
    if has_res:
        res_ref = refs[idx]; idx += 1
    if has_out_ln:
        og_ref, ob_ref = refs[idx], refs[idx + 1]; idx += 2
    o_ref = refs[idx]; idx += 1
    acc_ref = refs[idx]; idx += 1
    if has_ln:
        xn_ref = refs[idx]; idx += 1

    @pl.when(pl.program_id(2) == 0)
    def _():
        acc_ref[...] = jnp.zeros_like(acc_ref)

    if has_ln:
        # LayerNorm prologue, hoisted: computed once per M block (first N tile), reused for
        # all N tiles.  The wrapper guarantees the K axis is untiled in this case.
        @pl.when(pl.program_id(1) == 0)
        def _():
            xf = x_ref[...].astype(jnp.float32)
            mu = jnp.mean(xf, axis=-1, keepdims=True)
            var = jnp.mean(jnp.square(xf - mu), axis=-1, keepdims=True)
            xn = (xf - mu) * jax.lax.rsqrt(var + ln_eps)
            xn = xn * g_ref[...].astype(jnp.float32) + gb_ref[...].astype(jnp.float32)
            xn_ref[...] = xn.astype(jnp.bfloat16)
        x_in = xn_ref[...]
    else:
        x_in = x_ref[...].astype(jnp.bfloat16)

    acc_ref[...] += jnp.dot(x_in, w_ref[...].astype(jnp.bfloat16),
                            preferred_element_type=jnp.float32)

    @pl.when(pl.program_id(2) == pl.num_programs(2) - 1)
    def _():
        y = acc_ref[...] + b_ref[...].astype(jnp.float32)
        if act == "gelu":
            # TODO(synk): tanh-approximate GELU; timm/HF default is the exact erf-based GELU.
            c = jnp.float32(0.7978845608028654)   # sqrt(2/pi)
            y = 0.5 * y * (1.0 + jnp.tanh(c * (y + 0.044715 * y * y * y)))
        elif act == "tanh":
            y = jnp.tanh(y)
        if has_res:
            y = y + res_ref[...].astype(jnp.float32)
        if has_out_ln:
            # Post-LN fused into the epilogue (wrapper guarantees tn == N).
            mu = jnp.mean(y, axis=-1, keepdims=True)
            var = jnp.mean(jnp.square(y - mu), axis=-1, keepdims=True)
            y = (y - mu) * jax.lax.rsqrt(var + out_ln_eps)
            y = y * og_ref[...].astype(jnp.float32) + ob_ref[...].astype(jnp.float32)
        o_ref[...] = y.astype(o_ref.dtype)


def _layernorm_kernel(x_ref, g_ref, b_ref, o_ref, *, eps):
    x = x_ref[...].astype(jnp.float32)
    mu = jnp.mean(x, axis=-1, keepdims=True)
    var = jnp.mean(jnp.square(x - mu), axis=-1, keepdims=True)
    xn = (x - mu) * jax.lax.rsqrt(var + eps)
    o_ref[...] = (xn * g_ref[...].astype(jnp.float32)
                  + b_ref[...].astype(jnp.float32)).astype(o_ref.dtype)


def _attention_kernel(*refs, scale, H, Dh, has_mask):
    """One (batch, q-tile) step.  qkv is packed [., 3D] with layout [Q | K | V], each D
    segment ordered (head, Dh).  Heads are processed one at a time (bounds the f32 score
    working set) and the per-head outputs are concatenated into a lane-dense [tq, D] write."""
    q_ref, kv_ref = refs[0], refs[1]
    if has_mask:
        mask_ref, o_ref = refs[2], refs[3]
    else:
        o_ref = refs[2]

    D = H * Dh
    qkv_q = q_ref[0]                       # [tq, 3D] bf16
    qkv_kv = kv_ref[0]                     # [S,  3D] bf16
    if has_mask:
        bias = mask_ref[0].astype(jnp.float32)   # [1, S], broadcast over q rows / heads

    outs = []
    for h in range(H):
        q = qkv_q[:, h * Dh:(h + 1) * Dh]                      # [tq, Dh] bf16
        k = qkv_kv[:, D + h * Dh:D + (h + 1) * Dh]             # [S,  Dh] bf16
        v = qkv_kv[:, 2 * D + h * Dh:2 * D + (h + 1) * Dh]     # [S,  Dh] bf16

        # scores: contract the Dh dims directly (no explicit transpose of k)
        s = jax.lax.dot_general(q, k, (((1,), (1,)), ((), ())),
                                preferred_element_type=jnp.float32) * scale   # [tq, S]
        if has_mask:
            s = s + bias
        m = jnp.max(s, axis=-1, keepdims=True)
        p = jnp.exp(s - m)
        p = p * pl.reciprocal(jnp.sum(p, axis=-1, keepdims=True), approx=True)

        o = jnp.dot(p.astype(jnp.bfloat16), v,
                    preferred_element_type=jnp.float32)                       # [tq, Dh]
        outs.append(o.astype(o_ref.dtype))

    o_ref[0] = jnp.concatenate(outs, axis=-1)   # lane-dense [tq, D] store


# -----------------------------------------------------------------------------
# Pallas wrappers
# -----------------------------------------------------------------------------
def linear(x, w, b, *, act="none",
           ln_g=None, ln_b=None, ln_eps=1e-6,
           residual=None,
           out_ln_g=None, out_ln_b=None, out_ln_eps=1e-12,
           out_dtype=jnp.bfloat16,
           tm_max=256, tn_max=256, tk_max=512):
    """y = outLN?( act(LN?(x) @ w + b) (+ residual) ).  x:[M,K], w:[K,N], b:[N]."""
    M, K = x.shape
    N = w.shape[1]
    has_ln = ln_g is not None
    has_res = residual is not None
    has_out_ln = out_ln_g is not None

    tm, Mp = _plan_rows(M, tm_max)
    tn = N if has_out_ln else _choose_tile(N, tn_max, 128)   # output LN needs the full row
    tk = K if has_ln else _choose_tile(K, tk_max, 128)       # input LN needs the full row

    if Mp != M:
        x = jnp.pad(x, ((0, Mp - M), (0, 0)))
        if has_res:
            residual = jnp.pad(residual, ((0, Mp - M), (0, 0)))

    grid = (Mp // tm, N // tn, K // tk)

    in_specs = [
        pl.BlockSpec((tm, tk), lambda i, j, k: (i, k)),
        pl.BlockSpec((tk, tn), lambda i, j, k: (k, j)),
        pl.BlockSpec((1, tn), lambda i, j, k: (0, j)),
    ]
    args = [x, w, b.reshape(1, N)]
    if has_ln:
        in_specs += [pl.BlockSpec((1, K), lambda i, j, k: (0, 0)),
                     pl.BlockSpec((1, K), lambda i, j, k: (0, 0))]
        args += [ln_g.reshape(1, K), ln_b.reshape(1, K)]
    if has_res:
        in_specs.append(pl.BlockSpec((tm, tn), lambda i, j, k: (i, j)))
        args.append(residual)
    if has_out_ln:
        in_specs += [pl.BlockSpec((1, N), lambda i, j, k: (0, 0)),
                     pl.BlockSpec((1, N), lambda i, j, k: (0, 0))]
        args += [out_ln_g.reshape(1, N), out_ln_b.reshape(1, N)]

    scratch = [pltpu.VMEM((tm, tn), jnp.float32)]
    if has_ln:
        scratch.append(pltpu.VMEM((tm, K), jnp.bfloat16))   # hoisted normalized rows

    # With the hoisted LN scratch the N axis must be walked in order -> mark it arbitrary.
    dims = ("parallel", "arbitrary" if has_ln else "parallel", "arbitrary")

    kernel = functools.partial(_linear_kernel, act=act, has_ln=has_ln, ln_eps=ln_eps,
                               has_res=has_res, has_out_ln=has_out_ln,
                               out_ln_eps=out_ln_eps)
    out = pl.pallas_call(
        kernel,
        out_shape=jax.ShapeDtypeStruct((Mp, N), out_dtype),
        grid=grid,
        in_specs=in_specs,
        out_specs=pl.BlockSpec((tm, tn), lambda i, j, k: (i, j)),
        scratch_shapes=scratch,
        compiler_params=pltpu.CompilerParams(dimension_semantics=dims),
    )(*args)
    if Mp != M:
        out = out[:M]
    return out


def layer_norm(x, g, b, eps=1e-6, out_dtype=jnp.bfloat16, tm_max=512):
    """Row-tiled standalone LayerNorm (only where it cannot be fused)."""
    M, D = x.shape
    tm, Mp = _plan_rows(M, tm_max)
    if Mp != M:
        x = jnp.pad(x, ((0, Mp - M), (0, 0)))
    out = pl.pallas_call(
        functools.partial(_layernorm_kernel, eps=eps),
        out_shape=jax.ShapeDtypeStruct((Mp, D), out_dtype),
        grid=(Mp // tm,),
        in_specs=[
            pl.BlockSpec((tm, D), lambda i: (i, 0)),
            pl.BlockSpec((1, D), lambda i: (0, 0)),
            pl.BlockSpec((1, D), lambda i: (0, 0)),
        ],
        out_specs=pl.BlockSpec((tm, D), lambda i: (i, 0)),
        compiler_params=pltpu.CompilerParams(dimension_semantics=("parallel",)),
    )(x, g.reshape(1, D), b.reshape(1, D))
    return out[:M] if Mp != M else out


def mha(qkv, *, heads, scale, mask_bias=None, tq_max=256):
    """qkv: [B, S, 3D] packed [Q|K|V]; mask_bias (optional): [B, 1, S] additive.
    Returns the lane-dense merged-head output [B, S, D] (bf16)."""
    B, S, threeD = qkv.shape
    D = threeD // 3
    Dh = D // heads
    tq = _choose_tile(S, tq_max, 8) if S % 8 == 0 else S
    has_mask = mask_bias is not None

    in_specs = [
        pl.BlockSpec((1, tq, threeD), lambda b, qi: (b, qi, 0)),   # q tile
        pl.BlockSpec((1, S, threeD), lambda b, qi: (b, 0, 0)),     # full K/V
    ]
    args = [qkv, qkv]
    if has_mask:
        in_specs.append(pl.BlockSpec((1, 1, S), lambda b, qi: (b, 0, 0)))
        args.append(mask_bias)

    return pl.pallas_call(
        functools.partial(_attention_kernel, scale=scale, H=heads, Dh=Dh, has_mask=has_mask),
        out_shape=jax.ShapeDtypeStruct((B, S, D), jnp.bfloat16),
        grid=(B, S // tq),
        in_specs=in_specs,
        out_specs=pl.BlockSpec((1, tq, D), lambda b, qi: (b, qi, 0)),
        compiler_params=pltpu.CompilerParams(
            dimension_semantics=("parallel", "parallel")),
    )(*args)


# -----------------------------------------------------------------------------
# Parameter initialization (deterministic, synthetic).  Matmul weights in bf16.
# -----------------------------------------------------------------------------
def init_params(key, cfg):
    keys = iter(jax.random.split(key, 256))

    def nrm(shape, std=0.02, dtype=jnp.bfloat16):
        return (jax.random.normal(next(keys), shape, jnp.float32) * std).astype(dtype)

    D = cfg["dim"]
    Dm = cfg["mlp"]
    C, p = cfg["chans"], cfg["patch"]
    n_tok = cfg["num_patches"] + 1

    params = {
        # ViT
        "patch_w": nrm((C * p * p, D)),
        "patch_b": jnp.zeros((D,), jnp.float32),
        "cls": nrm((1, 1, D), dtype=jnp.float32),
        "pos": nrm((1, n_tok, D), dtype=jnp.float32),
        "vit_blocks": [],
        "vit_ln_g": jnp.ones((D,), jnp.float32),
        "vit_ln_b": jnp.zeros((D,), jnp.float32),
        # BERT
        "word_emb": nrm((cfg["vocab"], D), dtype=jnp.float32),
        "pos_emb": nrm((cfg["max_pos"], D), dtype=jnp.float32),
        "type_emb": nrm((2, D), dtype=jnp.float32),
        "emb_ln_g": jnp.ones((D,), jnp.float32),
        "emb_ln_b": jnp.zeros((D,), jnp.float32),
        "bert_layers": [],
        "pooler_w": nrm((D, D)),
        "pooler_b": jnp.zeros((D,), jnp.float32),
    }

    for _ in range(cfg["vit_depth"]):
        params["vit_blocks"].append({
            "ln1_g": jnp.ones((D,), jnp.float32), "ln1_b": jnp.zeros((D,), jnp.float32),
            "qkv_w": nrm((D, 3 * D)), "qkv_b": jnp.zeros((3 * D,), jnp.float32),
            "proj_w": nrm((D, D)), "proj_b": jnp.zeros((D,), jnp.float32),
            "ln2_g": jnp.ones((D,), jnp.float32), "ln2_b": jnp.zeros((D,), jnp.float32),
            "fc1_w": nrm((D, Dm)), "fc1_b": jnp.zeros((Dm,), jnp.float32),
            "fc2_w": nrm((Dm, D)), "fc2_b": jnp.zeros((D,), jnp.float32),
        })

    for _ in range(cfg["bert_depth"]):
        params["bert_layers"].append({
            # fused Q/K/V projection, output columns ordered [Q | K | V], each (head, Dh)
            "qkv_w": nrm((D, 3 * D)), "qkv_b": jnp.zeros((3 * D,), jnp.float32),
            "ao_w": nrm((D, D)), "ao_b": jnp.zeros((D,), jnp.float32),
            "attn_ln_g": jnp.ones((D,), jnp.float32), "attn_ln_b": jnp.zeros((D,), jnp.float32),
            "f1_w": nrm((D, Dm)), "f1_b": jnp.zeros((Dm,), jnp.float32),
            "f2_w": nrm((Dm, D)), "f2_b": jnp.zeros((D,), jnp.float32),
            "ffn_ln_g": jnp.ones((D,), jnp.float32), "ffn_ln_b": jnp.zeros((D,), jnp.float32),
        })

    return params


# -----------------------------------------------------------------------------
# Forward passes
# -----------------------------------------------------------------------------
def vit_forward(params, img, cfg):
    B, C, Himg, Wimg = img.shape
    p = cfg["patch"]
    Hp, Wp = Himg // p, Wimg // p
    D, H = cfg["dim"], cfg["heads"]
    Dh = D // H
    scale = 1.0 / (Dh ** 0.5)

    # unfold NCHW into patches with (c, ph, pw) ordering -> Conv2d-as-matmul (XLA layout glue)
    x = img.reshape(B, C, Hp, p, Wp, p).transpose(0, 2, 4, 1, 3, 5)
    x = x.reshape(B * Hp * Wp, C * p * p).astype(jnp.float32)
    tok = linear(x, params["patch_w"], params["patch_b"]).reshape(B, Hp * Wp, D)

    cls = jnp.broadcast_to(params["cls"], (B, 1, D))
    x = (jnp.concatenate([cls, tok.astype(jnp.float32)], axis=1)
         + params["pos"]).astype(jnp.bfloat16)
    S = x.shape[1]

    for blk in params["vit_blocks"]:
        xf = x.reshape(B * S, D)
        # pre-LN fused into the QKV matmul; qkv stays packed [B*S, 3D] (no head transpose)
        qkv = linear(xf, blk["qkv_w"], blk["qkv_b"],
                     ln_g=blk["ln1_g"], ln_b=blk["ln1_b"], ln_eps=1e-6)
        a = mha(qkv.reshape(B, S, 3 * D), heads=H, scale=scale)      # [B, S, D] lane-dense
        a = a.reshape(B * S, D)
        # output projection with fused residual add
        x = linear(a, blk["proj_w"], blk["proj_b"], residual=xf)

        xf = x
        # pre-LN fused into fc1 (+ GELU)
        h = linear(xf, blk["fc1_w"], blk["fc1_b"], act="gelu",
                   ln_g=blk["ln2_g"], ln_b=blk["ln2_b"], ln_eps=1e-6)
        # fc2 with fused residual add
        x = linear(h, blk["fc2_w"], blk["fc2_b"], residual=xf).reshape(B, S, D)

    xf = layer_norm(x.reshape(B * S, D), params["vit_ln_g"], params["vit_ln_b"],
                    eps=1e-6, out_dtype=jnp.float32)
    return xf.reshape(B, S, D)


def bert_forward(params, txt, mask, cfg):
    B, S = txt.shape
    D, H = cfg["dim"], cfg["heads"]
    Dh = D // H
    scale = 1.0 / (Dh ** 0.5)

    # embedding lookups (gather) kept in plain JAX glue
    word = jnp.take(params["word_emb"], txt, axis=0)           # [B, S, D]
    pos = params["pos_emb"][:S][None, :, :]                    # [1, S, D]
    # TODO(synk): token_type_ids hardcoded to 0 (matches the synthetic test inputs).
    typ = params["type_emb"][0][None, None, :]                 # [1, 1, D]
    x = layer_norm((word + pos + typ).reshape(B * S, D),
                   params["emb_ln_g"], params["emb_ln_b"], eps=1e-12)   # [B*S, D] bf16

    # additive mask kept as a single [B, 1, S] row; broadcast inside the attention kernel
    mask_bias = ((1.0 - mask.astype(jnp.float32)) * -10000.0).reshape(B, 1, S)

    for blk in params["bert_layers"]:
        xf = x                                                  # [B*S, D]
        qkv = linear(xf, blk["qkv_w"], blk["qkv_b"])            # fused Q/K/V projection
        a = mha(qkv.reshape(B, S, 3 * D), heads=H, scale=scale, mask_bias=mask_bias)
        a = a.reshape(B * S, D)
        # attention output projection with fused residual add AND fused post-LN
        x = linear(a, blk["ao_w"], blk["ao_b"], residual=xf,
                   out_ln_g=blk["attn_ln_g"], out_ln_b=blk["attn_ln_b"], out_ln_eps=1e-12)

        h = linear(x, blk["f1_w"], blk["f1_b"], act="gelu")
        # FFN output projection with fused residual add AND fused post-LN
        x = linear(h, blk["f2_w"], blk["f2_b"], residual=x,
                   out_ln_g=blk["ffn_ln_g"], out_ln_b=blk["ffn_ln_b"], out_ln_eps=1e-12)

    x = x.reshape(B, S, D)
    # pooler: tanh(W @ h_cls + b)  == txt[1] of a HF BertModel
    pooled = linear(x[:, 0, :], params["pooler_w"], params["pooler_b"],
                    act="tanh", out_dtype=jnp.float32)
    return pooled


def vit_bert_forward(params, img, txt, mask, cfg):
    img_f4 = vit_forward(params, img, cfg)          # [B, N+1, D]
    txt_f4 = bert_forward(params, txt, mask, cfg)   # [B, D]
    return img_f4, txt_f4


# -----------------------------------------------------------------------------
# Main
# -----------------------------------------------------------------------------
if __name__ == "__main__":
    cfg = dict(
        chans=3, patch=16, img=32,
        dim=32, heads=4, mlp=128,
        vit_depth=2, bert_depth=2,
        vocab=100, max_pos=16, seq=8,
    )
    cfg["num_patches"] = (cfg["img"] // cfg["patch"]) ** 2   # 4 patches -> 5 tokens

    key = jax.random.PRNGKey(0)
    k_img, k_txt, k_param = jax.random.split(key, 3)

    img = jax.random.normal(k_img, (2, cfg["chans"], cfg["img"], cfg["img"]), jnp.float32)
    txt = jax.random.randint(k_txt, (2, cfg["seq"]), 0, cfg["vocab"], jnp.int32)
    # attention mask: first sequence full, second padded at the tail
    mask = jnp.stack([jnp.ones((cfg["seq"],), jnp.int32),
                      (jnp.arange(cfg["seq"]) < 6).astype(jnp.int32)], axis=0)

    params = init_params(k_param, cfg)

    img_f4, txt_f4 = vit_bert_forward(params, img, txt, mask, cfg)
    jax.block_until_ready((img_f4, txt_f4))

    assert img_f4.shape == (2, cfg["num_patches"] + 1, cfg["dim"])
    assert txt_f4.shape == (2, cfg["dim"])
    assert jnp.all(jnp.isfinite(img_f4)) and jnp.all(jnp.isfinite(txt_f4))
    print("KERNEL_OK")
</pallas_src>

<mosaic_0001>
module attributes {stable_mosaic.version = 11 : i64} {
  func.func @_linear_kernel(%arg0: i32, %arg1: i32, %arg2: i32, %arg3: memref<8x384xf32, #tpu.memory_space<vmem>>, %arg4: memref<384x32xbf16, #tpu.memory_space<vmem>>, %arg5: memref<1x32xf32, #tpu.memory_space<vmem>>, %arg6: memref<8x32xbf16, #tpu.memory_space<vmem>>, %arg7: memref<8x32xf32, #tpu.memory_space<vmem>>) attributes {dimension_semantics = [#tpu.dimension_semantics<parallel>, #tpu.dimension_semantics<parallel>, #tpu.dimension_semantics<arbitrary>], iteration_bounds = array<i64: 1, 1, 2>, scalar_prefetch = 0 : i64, scratch_operands = 1 : i64, tpu.core_type = #tpu.core_type<tc>, window_params = [{transform_indices = @transform_0, window_bounds = array<i64: 8, 384>}, {transform_indices = @transform_1, window_bounds = array<i64: 384, 32>}, {transform_indices = @transform_2, window_bounds = array<i64: 1, 32>}, {transform_indices = @transform_3, window_bounds = array<i64: 8, 32>}]} {
    %c0_i32 = arith.constant 0 : i32
    %0 = arith.cmpi eq, %arg2, %c0_i32 : i32
    %1 = arith.extui %0 : i1 to i32
    %c0_i32_0 = arith.constant 0 : i32
    %2 = arith.cmpi ne, %1, %c0_i32_0 : i32
    scf.if %2 {
      %cst_9 = arith.constant 0.000000e+00 : f32
      %13 = vector.broadcast %cst_9 : f32 to vector<8x32xf32>
      %c0_10 = arith.constant 0 : index
      %c0_11 = arith.constant 0 : index
      %14 = vector.load %arg7[%c0_10, %c0_11] : memref<8x32xf32, #tpu.memory_space<vmem>>, vector<8x32xf32>
      tpu.vector_store %arg7[%c0_10, %c0_11], %13 {strides = array<i32>} : memref<8x32xf32, #tpu.memory_space<vmem>>, vector<8x32xf32>,
    } else {
    }
    %c0 = arith.constant 0 : index
    %c0_1 = arith.constant 0 : index
    %3 = vector.load %arg3[%c0, %c0_1] : memref<8x384xf32, #tpu.memory_space<vmem>>, vector<8x384xf32>
    %4 = arith.truncf %3 : vector<8x384xf32> to vector<8x384xbf16>
    %c0_2 = arith.constant 0 : index
    %c0_3 = arith.constant 0 : index
    %5 = vector.load %arg7[%c0_2, %c0_3] : memref<8x32xf32, #tpu.memory_space<vmem>>, vector<8x32xf32>
    %c0_4 = arith.constant 0 : index
    %c0_5 = arith.constant 0 : index
    %6 = vector.load %arg4[%c0_4, %c0_5] : memref<384x32xbf16, #tpu.memory_space<vmem>>, vector<384x32xbf16>
    %cst = arith.constant dense<0.000000e+00> : vector<8x32xf32>
    %7 = tpu.matmul %4, %6, %cst {dimension_numbers = #tpu.dot_dimension_numbers<[1], [0], [0], [1], [0, 0, 1, 1], [], []>} : vector<8x384xbf16>, vector<384x32xbf16>, vector<8x32xf32> -> vector<8x32xf32>
    %8 = arith.addf %5, %7 : vector<8x32xf32>
    %c0_6 = arith.constant 0 : index
    %c0_7 = arith.constant 0 : index
    %9 = vector.load %arg7[%c0_6, %c0_7] : memref<8x32xf32, #tpu.memory_space<vmem>>, vector<8x32xf32>
    tpu.vector_store %arg7[%c0_6, %c0_7], %8 {strides = array<i32>} : memref<8x32xf32, #tpu.memory_space<vmem>>, vector<8x32xf32>,
    %c1_i32 = arith.constant 1 : i32
    %10 = arith.cmpi eq, %arg2, %c1_i32 : i32
    %11 = arith.extui %10 : i1 to i32
    %c0_i32_8 = arith.constant 0 : i32
    %12 = arith.cmpi ne, %11, %c0_i32_8 : i32
    scf.if %12 {
      %c0_9 = arith.constant 0 : index
      %c0_10 = arith.constant 0 : index
      %13 = vector.load %arg7[%c0_9, %c0_10] : memref<8x32xf32, #tpu.memory_space<vmem>>, vector<8x32xf32>
      %c0_11 = arith.constant 0 : index
      %c0_12 = arith.constant 0 : index
      %14 = vector.load %arg5[%c0_11, %c0_12] : memref<1x32xf32, #tpu.memory_space<vmem>>, vector<1x32xf32>
      %15 = vector.broadcast %14 : vector<1x32xf32> to vector<8x32xf32>
      %16 = arith.addf %13, %15 : vector<8x32xf32>
      %17 = arith.truncf %16 : vector<8x32xf32> to vector<8x32xbf16>
      %c0_13 = arith.constant 0 : index
      %c0_14 = arith.constant 0 : index
      %18 = vector.load %arg6[%c0_13, %c0_14] : memref<8x32xbf16, #tpu.memory_space<vmem>>, vector<8x32xbf16>
      tpu.vector_store %arg6[%c0_13, %c0_14], %17 {strides = array<i32>} : memref<8x32xbf16, #tpu.memory_space<vmem>>, vector<8x32xbf16>,
    } else {
    }
    return
  }
  func.func @transform_0(%arg0: i32, %arg1: i32, %arg2: i32) -> (i32, i32) {
    %c0_i32 = arith.constant 0 : i32
    return %arg0, %arg2 : i32, i32
  }
  func.func @transform_1(%arg0: i32, %arg1: i32, %arg2: i32) -> (i32, i32) {
    %c0_i32 = arith.constant 0 : i32
    return %arg2, %arg1 : i32, i32
  }
  func.func @transform_2(%arg0: i32, %arg1: i32, %arg2: i32) -> (i32, i32) {
    %c0_i32 = arith.constant 0 : i32
    %c0_i32_0 = arith.constant 0 : i32
    return %c0_i32, %arg1 : i32, i32
  }
  func.func @transform_3(%arg0: i32, %arg1: i32, %arg2: i32) -> (i32, i32) {
    %c0_i32 = arith.constant 0 : i32
    return %arg0, %arg1 : i32, i32
  }
}

</mosaic_0001>

<llo_original>
// kernel: tpu_custom_call.1
$region0: #{tpu_custom_call.1}
  #allocation0 [shape = 'u32[]', space=smem, size = 0x4, offset = 0x4, fixed_abs, tag = 'smem constant byte address 0x4 - core index']
  #allocation1 [shape = 'u32[72,128]{1,0:T(1,128)}', space=vmem, size = 0x9000, scoped, tag = 'internal scratch']
  #allocation2 [shape = 'f32[8,32]{1,0:T(8,128)}', space=vmem, size = 0x1000, scoped, tag = 'scratch operand']
  %s0 = inlined_call_operand.vmem [shape: f32[8,768], index: 0, kind: input, shape index: {}]
  %s1 = inlined_call_operand.vmem [shape: bf16[768,32], index: 1, kind: input, shape index: {}]
  %s2 = inlined_call_operand.vmem [shape: f32[1,32], index: 2, kind: input, shape index: {}]
  %s3 = inlined_call_operand.hbm [shape: bf16[8,32], index: 3, kind: output, shape index: {}]
  %s4 = sld [smem:[#allocation0]]
  $region53: #{tpu_custom_call.1} parent=0
    _
  %s6 = ssub.s32 1, %s4
  %s7 = scalar_select 0, %s6, %s4
  $region1: #{tpu_custom_call.1} parent=0
    #allocation3 [shape = 'u8[2048]{0}', space=vmem, size = 0x800, scoped, tag = 'output window, operand 0, single buffered']
    #allocation4 [shape = 's32[2]{0}', space=sflag, size = 0x8, scoped, tag = 'scoped memory for tpu_custom_call.1']
    %8 = vsyncpa [#allocation4], 0
    loop: start=0, step=1, limit=4
    $region2: #{tpu_custom_call.1} parent=1 // loop_pre_header
      _
    $region3: #{tpu_custom_call.1} parent=1 // loop_header
      %s10 = sphi 0, %s14
      %p11 = scmp.ge.s32.totalorder %s10, 4
      %s17 = sphi 0, %s36
      %s18 = sphi 0, %s32
      %s19 = sphi 0, %s28
      %s20 = sphi 0, %s17
      %s21 = sphi 0, %s18
      %s22 = sphi 0, %s19
      %s23 = sphi 0, %s20
      %s24 = sphi 0, %s21
      %s25 = sphi 0, %s22
      %s41 = sphi 0, %s43
      %s44 = sphi 0, %s41
      %s45 = sphi 0, %s44
      %s61 = sphi 0, %s45
      %s69 = sphi 0, %s71
      %s72 = sphi 0, %s69
      %s73 = sphi 0, %s72
      %s89 = sphi 0, %s73
      %s95 = sphi 0, %s97
      %s98 = sphi 0, %s95
      %s99 = sphi 0, %s98
      %s115 = sphi 0, %s99
      %s123 = sphi 0, %s125
      %s126 = sphi 0, %s123
      %s127 = sphi 0, %s126
      %s143 = sphi 0, %s127
    $region4: #{tpu_custom_call.1} parent=1 // loop_header_branch
      %13 = sbr.rel (%p11) target = $region8
    $region5: #{tpu_custom_call.1} parent=1 // loop_body
      %s15 = ssub.s32 %s10, 1
      %s16 = ssub.s32 %s10, 2
      %s26 = sadd.s32 1, %s19
      %p27 = scmp.ge.s32.totalorder %s26, 2
      %s28 = scalar_select %p27, 0, %s26
      %s29 = sadd.s32 1, %s18
      %s30 = scalar_select %p27, %s29, %s18
      %p31 = scmp.ge.s32.totalorder %s30, 1
      %s32 = scalar_select %p31, 0, %s30
      %s33 = sadd.s32 1, %s17
      %s34 = scalar_select %p31, %s33, %s17
      %p35 = scmp.ge.s32.totalorder %s34, 1
      %s36 = scalar_select %p35, 0, %s34
      %s37 = ssub.s32 %s17, %s36
      %s38 = ssub.s32 %s19, %s28
      %s39 = sor.u32 %s37, %s38
      %p40 = scmp.eq.s32.totalorder %s39, 0
      %s42 = sadd.s32 %s41, 1
      %s43 = scalar_select %p40, %s41, %s42
      %p46 = pneg %p40
      %p47 = scmp.eq.s32.totalorder %s10, 1
      %p48 = por %p46, %p47
      %p49 = scmp.ne.s32.totalorder %s41, %s44
      %p50 = scmp.eq.s32.totalorder %s10, 0
      %p51 = por %p49, %p50
      %p52 = scmp.ne.s32.totalorder %s41, %s44
      %p53 = scmp.eq.s32.totalorder %s15, 1
      %p54 = por %p52, %p53
      %p55 = scmp.ne.s32.totalorder %s44, %s45
      %p56 = scmp.eq.s32.totalorder %s15, 0
      %p57 = por %p55, %p56
      %p58 = scmp.ne.s32.totalorder %s44, %s45
      %p59 = scmp.eq.s32.totalorder %s16, 1
      %p60 = por %p58, %p59
      %p62 = scmp.ne.s32.totalorder %s45, %s61
      %p63 = scmp.eq.s32.totalorder %s16, 0
      %p64 = por %p62, %p63
      %s65 = ssub.s32 %s19, %s28
      %s66 = ssub.s32 %s18, %s32
      %s67 = sor.u32 %s65, %s66
      %p68 = scmp.eq.s32.totalorder %s67, 0
      %s70 = sadd.s32 %s69, 1
      %s71 = scalar_select %p68, %s69, %s70
      %p74 = pneg %p68
      %p75 = scmp.eq.s32.totalorder %s10, 1
      %p76 = por %p74, %p75
      %p77 = scmp.ne.s32.totalorder %s69, %s72
      %p78 = scmp.eq.s32.totalorder %s10, 0
      %p79 = por %p77, %p78
      %p80 = scmp.ne.s32.totalorder %s69, %s72
      %p81 = scmp.eq.s32.totalorder %s15, 1
      %p82 = por %p80, %p81
      %p83 = scmp.ne.s32.totalorder %s72, %s73
      %p84 = scmp.eq.s32.totalorder %s15, 0
      %p85 = por %p83, %p84
      %p86 = scmp.ne.s32.totalorder %s72, %s73
      %p87 = scmp.eq.s32.totalorder %s16, 1
      %p88 = por %p86, %p87
      %p90 = scmp.ne.s32.totalorder %s73, %s89
      %p91 = scmp.eq.s32.totalorder %s16, 0
      %p92 = por %p90, %p91
      %s93 = ssub.s32 %s18, %s32
      %p94 = scmp.eq.s32.totalorder %s93, 0
      %s96 = sadd.s32 %s95, 1
      %s97 = scalar_select %p94, %s95, %s96
      %p100 = pneg %p94
      %p101 = scmp.eq.s32.totalorder %s10, 1
      %p102 = por %p100, %p101
      %p103 = scmp.ne.s32.totalorder %s95, %s98
      %p104 = scmp.eq.s32.totalorder %s10, 0
      %p105 = por %p103, %p104
      %p106 = scmp.ne.s32.totalorder %s95, %s98
      %p107 = scmp.eq.s32.totalorder %s15, 1
      %p108 = por %p106, %p107
      %p109 = scmp.ne.s32.totalorder %s98, %s99
      %p110 = scmp.eq.s32.totalorder %s15, 0
      %p111 = por %p109, %p110
      %p112 = scmp.ne.s32.totalorder %s98, %s99
      %p113 = scmp.eq.s32.totalorder %s16, 1
      %p114 = por %p112, %p113
      %p116 = scmp.ne.s32.totalorder %s99, %s115
      %p117 = scmp.eq.s32.totalorder %s16, 0
      %p118 = por %p116, %p117
      %s119 = ssub.s32 %s17, %s36
      %s120 = ssub.s32 %s18, %s32
      %s121 = sor.u32 %s119, %s120
      %p122 = scmp.eq.s32.totalorder %s121, 0
      %s124 = sadd.s32 %s123, 1
      %s125 = scalar_select %p122, %s123, %s124
      %p128 = pneg %p122
      %p129 = scmp.eq.s32.totalorder %s10, 1
      %p130 = por %p128, %p129
      %p131 = scmp.ne.s32.totalorder %s123, %s126
      %p132 = scmp.eq.s32.totalorder %s10, 0
      %p133 = por %p131, %p132
      %p134 = scmp.ne.s32.totalorder %s123, %s126
      %p135 = scmp.eq.s32.totalorder %s15, 1
      %p136 = por %p134, %p135
      %p137 = scmp.ne.s32.totalorder %s126, %s127
      %p138 = scmp.eq.s32.totalorder %s15, 0
      %p139 = por %p137, %p138
      %p140 = scmp.ne.s32.totalorder %s126, %s127
      %p141 = scmp.eq.s32.totalorder %s16, 1
      %p142 = por %p140, %p141
      %p144 = scmp.ne.s32.totalorder %s127, %s143
      %p145 = scmp.eq.s32.totalorder %s16, 0
      %p146 = por %p144, %p145
      %p147 = scmp.le.s32.totalorder 1, %s10
      %p148 = scmp.lt.s32.totalorder %s10, 3
      %p149 = pnand %p147, %p148
      %p150 = pneg %p149
      // Predicated region
      $region9: #{tpu_custom_call.1} parent=5 // pred_check
        _
      $region10: #{tpu_custom_call.1} parent=5 // pred_check_branch
        %152 = sbr.rel (%p149) target = $region12
      $region11: #{tpu_custom_call.1} parent=5 // pred_region
        %s153 = ssub.s32 %s10, 1
        // Predicated region
        $region13: #{tpu_custom_call.1} parent=11 // pred_check
          %p154 = pneg %p111
        $region14: #{tpu_custom_call.1} parent=11 // pred_check_branch
          %156 = sbr.rel (%p154) target = $region16
        $region15: #{tpu_custom_call.1} parent=11 // pred_region
          %p157 = scmp.lt.s32.totalorder %s21, 0
          %s158 = scalar_select %p157, %s21, 0
          %s159 = scalar_lea.vmem %s2, %s158
        $region16: #{tpu_custom_call.1} parent=11 // pred_fallthru
          _
      $region12: #{tpu_custom_call.1} parent=5 // pred_fallthru
        _
      %p160 = scmp.lt.s32.totalorder %s10, 2
      // Predicated region
      $region17: #{tpu_custom_call.1} parent=5 // pred_check
        %p161 = pneg %p160
      $region18: #{tpu_custom_call.1} parent=5 // pred_check_branch
        %163 = sbr.rel (%p161) target = $region20
      $region19: #{tpu_custom_call.1} parent=5 // pred_region
        // Predicated region
        $region21: #{tpu_custom_call.1} parent=19 // pred_check
          %p164 = pneg %p51
        $region22: #{tpu_custom_call.1} parent=19 // pred_check_branch
          %166 = sbr.rel (%p164) target = $region24
        $region23: #{tpu_custom_call.1} parent=19 // pred_region
          %s167 = smul.u32 3, %s19
          %p168 = scmp.lt.s32.totalorder %s17, 0
          %s169 = scalar_select %p168, %s17, 0
          %p170 = scmp.lt.s32.totalorder %s167, 5
          %s171 = scalar_select %p170, %s167, 5
          %s172 = smul.addr %s169, 6
          %s173 = sadd.s32 %s171, %s172
          %s174 = smul.addr %s173, 8
          %s175 = scalar_lea.vmem %s0, %s174
          %s176 = smul.u32 3, %s19
        $region24: #{tpu_custom_call.1} parent=19 // pred_fallthru
          _
        // Predicated region
        $region25: #{tpu_custom_call.1} parent=19 // pred_check
          %p177 = pneg %p79
        $region26: #{tpu_custom_call.1} parent=19 // pred_check_branch
          %179 = sbr.rel (%p177) target = $region28
        $region27: #{tpu_custom_call.1} parent=19 // pred_region
          %s180 = smul.u32 48, %s19
          %p181 = scmp.lt.s32.totalorder %s180, 95
          %s182 = scalar_select %p181, %s180, 95
          %p183 = scmp.lt.s32.totalorder %s18, 0
          %s184 = scalar_select %p183, %s18, 0
          %s185 = sadd.s32 %s184, %s182
          %s186 = smul.addr %s185, 4
          %s187 = scalar_lea.vmem %s1, %s186
          %s188 = smul.u32 48, %s19
        $region28: #{tpu_custom_call.1} parent=19 // pred_fallthru
          _
      $region20: #{tpu_custom_call.1} parent=5 // pred_fallthru
        _
      %p189 = scmp.le.s32.totalorder 1, %s10
      %p190 = scmp.lt.s32.totalorder %s10, 3
      %p191 = pnand %p189, %p190
      %p192 = pneg %p191
      // Predicated region
      $region29: #{tpu_custom_call.1} parent=5 // pred_check
        _
      $region30: #{tpu_custom_call.1} parent=5 // pred_check_branch
        %194 = sbr.rel (%p191) target = $region32
      $region31: #{tpu_custom_call.1} parent=5 // pred_region
        %s195 = ssub.s32 %s10, 1
        %s196 = smul.u32 3, %s22
        %p197 = scmp.lt.s32.totalorder %s20, 0
        %s198 = scalar_select %p197, %s20, 0
        %p199 = scmp.lt.s32.totalorder %s196, 5
        %s200 = scalar_select %p199, %s196, 5
        %s201 = smul.addr %s198, 6
        %s202 = sadd.s32 %s200, %s201
        %s203 = smul.addr %s202, 8
        %s204 = scalar_lea.vmem %s0, %s203
        %p205 = pneg %p57
        %p206 = pneg %p54
        %s207 = smul.u32 48, %s22
        %p208 = scmp.lt.s32.totalorder %s207, 95
        %s209 = scalar_select %p208, %s207, 95
        %p210 = scmp.lt.s32.totalorder %s21, 0
        %s211 = scalar_select %p210, %s21, 0
        %s212 = sadd.s32 %s211, %s209
        %s213 = smul.addr %s212, 4
        %s214 = scalar_lea.vmem %s1, %s213
        %p215 = pneg %p85
        %p216 = pneg %p82
        %p217 = scmp.lt.s32.totalorder %s21, 0
        %s218 = scalar_select %p217, %s21, 0
        %s219 = scalar_lea.vmem %s2, %s218
        %p220 = pneg %p111
        %p221 = pneg %p108
        %p222 = pneg %p139
        %p223 = pneg %p136
        %s224 = smul.u32 3, %s22
        %p225 = scmp.lt.s32.totalorder %s20, 0
        %s226 = scalar_select %p225, %s20, 0
        %p227 = scmp.lt.s32.totalorder %s224, 5
        %s228 = scalar_select %p227, %s224, 5
        %s229 = smul.addr %s226, 6
        %s230 = sadd.s32 %s228, %s229
        %s231 = smul.addr %s230, 8
        %s232 = scalar_lea.vmem %s0, %s231
        %s233 = smul.u32 3, %s22
        %s234 = smul.u32 48, %s22
        %p235 = scmp.lt.s32.totalorder %s234, 95
        %s236 = scalar_select %p235, %s234, 95
        %p237 = scmp.lt.s32.totalorder %s21, 0
        %s238 = scalar_select %p237, %s21, 0
        %s239 = sadd.s32 %s238, %s236
        %s240 = smul.addr %s239, 4
        %s241 = scalar_lea.vmem %s1, %s240
        %s242 = smul.u32 48, %s22
        %p243 = scmp.lt.s32.totalorder %s21, 0
        %s244 = scalar_select %p243, %s21, 0
        %s245 = scalar_lea.vmem %s2, %s244
        %p246 = scmp.eq.s32.totalorder %s22, 0
        // Predicated region
        $region33: #{tpu_custom_call.1} parent=31 // pred_check
          %p247 = pneg %p246
        $region34: #{tpu_custom_call.1} parent=31 // pred_check_branch
          %249 = sbr.rel (%p247) target = $region36
        $region35: #{tpu_custom_call.1} parent=31 // pred_region
          %vm250 = vcmask 261120
          %251 = vst.msk [vmem:[#allocation2] sm:$0xff] %vm250, 0.0
        $region36: #{tpu_custom_call.1} parent=31 // pred_fallthru
          _
        %v252 = vld [vmem:[%s232] sm:$0xff]
        %v253 = vld [vmem:[%s232 + $0x8] sm:$0xff]
        %v254 = vld [vmem:[%s232 + $0x10] sm:$0xff]
        %v255 = vpack.c.bf16 %v252, %v252
        %v256 = vpack.c.bf16 %v253, %v253
        %v257 = vpack.c.bf16 %v254, %v254
        %v258 = vld [vmem:[#allocation2] sm:$0xff]
        %v259 = vld [vmem:[%s241] sm:$0xf]
        %v260 = vld [vmem:[%s241 + $0x4] sm:$0xf]
        %v261 = vld [vmem:[%s241 + $0x8] sm:$0xf]
        %v262 = vld [vmem:[%s241 + $0xc] sm:$0xf]
        %v263 = vld [vmem:[%s241 + $0x10] sm:$0xf]
        %v264 = vld [vmem:[%s241 + $0x14] sm:$0xf]
        %v265 = vld [vmem:[%s241 + $0x18] sm:$0xf]
        %v266 = vld [vmem:[%s241 + $0x1c] sm:$0xf]
        %v267 = vld [vmem:[%s241 + $0x20] sm:$0xf]
        %v268 = vld [vmem:[%s241 + $0x24] sm:$0xf]
        %v269 = vld [vmem:[%s241 + $0x28] sm:$0xf]
        %v270 = vld [vmem:[%s241 + $0x2c] sm:$0xf]
        %v271 = vld [vmem:[%s241 + $0x30] sm:$0xf]
        %v272 = vld [vmem:[%s241 + $0x34] sm:$0xf]
        %v273 = vld [vmem:[%s241 + $0x38] sm:$0xf]
        %v274 = vld [vmem:[%s241 + $0x3c] sm:$0xf]
        %v275 = vld [vmem:[%s241 + $0x40] sm:$0xf]
        %v276 = vld [vmem:[%s241 + $0x44] sm:$0xf]
        %v277 = vld [vmem:[%s241 + $0x48] sm:$0xf]
        %v278 = vld [vmem:[%s241 + $0x4c] sm:$0xf]
        %v279 = vld [vmem:[%s241 + $0x50] sm:$0xf]
        %v280 = vld [vmem:[%s241 + $0x54] sm:$0xf]
        %v281 = vld [vmem:[%s241 + $0x58] sm:$0xf]
        %v282 = vld [vmem:[%s241 + $0x5c] sm:$0xf]
        %v283 = vld [vmem:[%s241 + $0x60] sm:$0xf]
        %v284 = vld [vmem:[%s241 + $0x64] sm:$0xf]
        %v285 = vld [vmem:[%s241 + $0x68] sm:$0xf]
        %v286 = vld [vmem:[%s241 + $0x6c] sm:$0xf]
        %v287 = vld [vmem:[%s241 + $0x70] sm:$0xf]
        %v288 = vld [vmem:[%s241 + $0x74] sm:$0xf]
        %v289 = vld [vmem:[%s241 + $0x78] sm:$0xf]
        %v290 = vld [vmem:[%s241 + $0x7c] sm:$0xf]
        %v291 = vld [vmem:[%s241 + $0x80] sm:$0xf]
        %v292 = vld [vmem:[%s241 + $0x84] sm:$0xf]
        %v293 = vld [vmem:[%s241 + $0x88] sm:$0xf]
        %v294 = vld [vmem:[%s241 + $0x8c] sm:$0xf]
        %v295 = vld [vmem:[%s241 + $0x90] sm:$0xf]
        %v296 = vld [vmem:[%s241 + $0x94] sm:$0xf]
        %v297 = vld [vmem:[%s241 + $0x98] sm:$0xf]
        %v298 = vld [vmem:[%s241 + $0x9c] sm:$0xf]
        %v299 = vld [vmem:[%s241 + $0xa0] sm:$0xf]
        %v300 = vld [vmem:[%s241 + $0xa4] sm:$0xf]
        %v301 = vld [vmem:[%s241 + $0xa8] sm:$0xf]
        %v302 = vld [vmem:[%s241 + $0xac] sm:$0xf]
        %v303 = vld [vmem:[%s241 + $0xb0] sm:$0xf]
        %v304 = vld [vmem:[%s241 + $0xb4] sm:$0xf]
        %v305 = vld [vmem:[%s241 + $0xb8] sm:$0xf]
        %v306 = vld [vmem:[%s241 + $0xbc] sm:$0xf]
        %v355 = vunpack.c.l.b16 %v259
        %v356 = vunpack.c.l.b16 %v260
        %v357 = vunpack.c.l.b16 %v261
        %v358 = vunpack.c.l.b16 %v262
        %v359 = vunpack.c.l.b16 %v263
        %v360 = vunpack.c.l.b16 %v264
        %v361 = vunpack.c.l.b16 %v265
        %v362 = vunpack.c.l.b16 %v266
        %v363 = vunpack.c.l.b16 %v267
        %v364 = vunpack.c.l.b16 %v268
        %v365 = vunpack.c.l.b16 %v269
        %v366 = vunpack.c.l.b16 %v270
        %v367 = vunpack.c.l.b16 %v271
        %v368 = vunpack.c.l.b16 %v272
        %v369 = vunpack.c.l.b16 %v273
        %v370 = vunpack.c.l.b16 %v274
        %v371 = vunpack.c.l.b16 %v275
        %v372 = vunpack.c.l.b16 %v276
        %v373 = vunpack.c.l.b16 %v277
        %v374 = vunpack.c.l.b16 %v278
        %v375 = vunpack.c.l.b16 %v279
        %v376 = vunpack.c.l.b16 %v280
        %v377 = vunpack.c.l.b16 %v281
        %v378 = vunpack.c.l.b16 %v282
        %v379 = vunpack.c.l.b16 %v283
        %v380 = vunpack.c.l.b16 %v284
        %v381 = vunpack.c.l.b16 %v285
        %v382 = vunpack.c.l.b16 %v286
        %v383 = vunpack.c.l.b16 %v287
        %v384 = vunpack.c.l.b16 %v288
        %v385 = vunpack.c.l.b16 %v289
        %v386 = vunpack.c.l.b16 %v290
        %v387 = vunpack.c.l.b16 %v291
        %v388 = vunpack.c.l.b16 %v292
        %v389 = vunpack.c.l.b16 %v293
        %v390 = vunpack.c.l.b16 %v294
        %v391 = vunpack.c.l.b16 %v295
        %v392 = vunpack.c.l.b16 %v296
        %v393 = vunpack.c.l.b16 %v297
        %v394 = vunpack.c.l.b16 %v298
        %v395 = vunpack.c.l.b16 %v299
        %v396 = vunpack.c.l.b16 %v300
        %v397 = vunpack.c.l.b16 %v301
        %v398 = vunpack.c.l.b16 %v302
        %v399 = vunpack.c.l.b16 %v303
        %v400 = vunpack.c.l.b16 %v304
        %v401 = vunpack.c.l.b16 %v305
        %v402 = vunpack.c.l.b16 %v306
        %v403 = vpack.c.b16 %v356, %v355
        %v404 = vpack.c.b16 %v358, %v357
        %v405 = vpack.c.b16 %v360, %v359
        %v406 = vpack.c.b16 %v362, %v361
        %v407 = vpack.c.b16 %v364, %v363
        %v408 = vpack.c.b16 %v366, %v365
        %v409 = vpack.c.b16 %v368, %v367
        %v410 = vpack.c.b16 %v370, %v369
        %v411 = vpack.c.b16 %v372, %v371
        %v412 = vpack.c.b16 %v374, %v373
        %v413 = vpack.c.b16 %v376, %v375
        %v414 = vpack.c.b16 %v378, %v377
        %v415 = vpack.c.b16 %v380, %v379
        %v416 = vpack.c.b16 %v382, %v381
        %v417 = vpack.c.b16 %v384, %v383
        %v418 = vpack.c.b16 %v386, %v385
        %v419 = vpack.c.b16 %v388, %v387
        %v420 = vpack.c.b16 %v390, %v389
        %v421 = vpack.c.b16 %v392, %v391
        %v422 = vpack.c.b16 %v394, %v393
        %v423 = vpack.c.b16 %v396, %v395
        %v424 = vpack.c.b16 %v398, %v397
        %v425 = vpack.c.b16 %v400, %v399
        %v426 = vpack.c.b16 %v402, %v401
        %451 = vmatpush.bf16.msra.mxu0 %v410
        %452 = vmatpush.bf16.msra.mxu0 %v409
        %453 = vmatpush.bf16.msra.mxu0 %v408
        %454 = vmatpush.bf16.msra.mxu0 %v407
        %455 = vmatpush.bf16.msra.mxu0 %v406
        %456 = vmatpush.bf16.msra.mxu0 %v405
        %457 = vmatpush.bf16.msra.mxu0 %v404
        %458 = vmatpush.bf16.msra.mxu0 %v403
        %459 = vmatmul.bf16.gmra.mxu0 %v255
        %v460 = vpop.f32.mrf.mxu0
        %v461 = vadd.f32 0.0, %v460
        %v462 = vpop.f32.mrf.mxu0
        %463 = vdwg.mxu0
        %464 = vmatpush.bf16.msra.mxu0 %v418
        %465 = vmatpush.bf16.msra.mxu0 %v417
        %466 = vmatpush.bf16.msra.mxu0 %v416
        %467 = vmatpush.bf16.msra.mxu0 %v415
        %468 = vmatpush.bf16.msra.mxu0 %v414
        %469 = vmatpush.bf16.msra.mxu0 %v413
        %470 = vmatpush.bf16.msra.mxu0 %v412
        %471 = vmatpush.bf16.msra.mxu0 %v411
        %472 = vmatmul.bf16.gmra.mxu0 %v256
        %v473 = vpop.f32.mrf.mxu0
        %v474 = vadd.f32 %v461, %v473
        %v475 = vpop.f32.mrf.mxu0
        %476 = vdwg.mxu0
        %477 = vmatpush.bf16.msra.mxu0 %v426
        %478 = vmatpush.bf16.msra.mxu0 %v425
        %479 = vmatpush.bf16.msra.mxu0 %v424
        %480 = vmatpush.bf16.msra.mxu0 %v423
        %481 = vmatpush.bf16.msra.mxu0 %v422
        %482 = vmatpush.bf16.msra.mxu0 %v421
        %483 = vmatpush.bf16.msra.mxu0 %v420
        %484 = vmatpush.bf16.msra.mxu0 %v419
        %485 = vmatmul.bf16.gmra.mxu0 %v257
        %v486 = vpop.f32.mrf.mxu0
        %v487 = vadd.f32 %v474, %v486
        %v488 = vpop.f32.mrf.mxu0
        %489 = vdwg.mxu0
        %v490 = vadd.f32 %v258, %v487
        %vm491 = vcmask 261120
        %492 = vst.msk [vmem:[#allocation2] sm:$0xff] %vm491, %v490
        %p493 = scmp.eq.s32.totalorder %s22, 1
        // Predicated region
        $region37: #{tpu_custom_call.1} parent=31 // pred_check
          %p494 = pneg %p493
        $region38: #{tpu_custom_call.1} parent=31 // pred_check_branch
          %496 = sbr.rel (%p494) target = $region40
        $region39: #{tpu_custom_call.1} parent=31 // pred_region
          %v497 = vld [vmem:[#allocation2] sm:$0xff]
          %v498 = vld [vmem:[%s245] sm:$0x1]
          %v500 = vperm.slane %v498, 0
          %v502 = vadd.f32 %v497, %v500
          %v503 = vpack.c.bf16 %v502, %v502
          %vm504 = vcmask 257024
          %505 = vst.msk [vmem:[#allocation3] sm:$0xf] %vm504, %v503
        $region40: #{tpu_custom_call.1} parent=31 // pred_fallthru
          _
        // Predicated region
        $region41: #{tpu_custom_call.1} parent=31 // pred_check
          %p506 = pneg %p136
        $region42: #{tpu_custom_call.1} parent=31 // pred_check_branch
          %508 = sbr.rel (%p506) target = $region44
        $region43: #{tpu_custom_call.1} parent=31 // pred_region
          %510 = vsyncadd [#allocation4], 0
          %s511 = sadd.s32 %s21, %s20
          %s512 = smul.addr %s511, 4
          %s513 = scalar_lea.hbm %s3, %s512
          %s515 = sshll.u32 [#allocation3], 4
          %s516 = int_to_ptr.vmem [resolvable:$true] %s515
          %s517 = sshll.u32 %s513, 4
          %s518 = int_to_ptr.hbm [resolvable:$true] %s517
          %520 = dma.vmem_to_hbm [thread:$0]  %s516, 64, %s518, [#allocation4]
        $region44: #{tpu_custom_call.1} parent=31 // pred_fallthru
          _
        // Predicated region
        $region45: #{tpu_custom_call.1} parent=31 // pred_check
          %p521 = pneg %p136
        $region46: #{tpu_custom_call.1} parent=31 // pred_check_branch
          %523 = sbr.rel (%p521) target = $region48
        $region47: #{tpu_custom_call.1} parent=31 // pred_region
          %525 = dma.done [#allocation4], 64
        $region48: #{tpu_custom_call.1} parent=31 // pred_fallthru
          _
      $region32: #{tpu_custom_call.1} parent=5 // pred_fallthru
        _
      %p526 = scmp.le.s32.totalorder 2, %s10
      // Predicated region
      $region49: #{tpu_custom_call.1} parent=5 // pred_check
        %p527 = pneg %p526
      $region50: #{tpu_custom_call.1} parent=5 // pred_check_branch
        %529 = sbr.rel (%p527) target = $region52
      $region51: #{tpu_custom_call.1} parent=5 // pred_region
        %s530 = ssub.s32 %s10, 2
      $region52: #{tpu_custom_call.1} parent=5 // pred_fallthru
        _
    $region6: #{tpu_custom_call.1} parent=1 // loop_footer
      %s14 = sadd.s32 1, %s10
    $region7: #{tpu_custom_call.1} parent=1 // loop_footer_branch
      %9 = sbr.rel target = $region3
    $region8: #{tpu_custom_call.1} parent=1 // loop_exit
      _
    %531 = vsyncpa [#allocation4], 1
    %s532 = scalar_lea.sflag [#allocation4], 1
    %533 = vsyncpa %s532, 1

</llo_original>
